<compile_context>
chip_gen: v6e
topology: v6e:2x2x1
jax: 0.10.0
libtpu: 0.0.40
codegen_flags: <defaults>
</compile_context>

<pallas_src>
import jax
import jax.numpy as jnp
import numpy as np
from jax.experimental import pallas as pl
from jax.experimental.pallas import tpu as pltpu

BN_EPS = 1e-5


# ---------------------------------------------------------------------------
# Phase 1: per-channel sum / sum-of-squares (one pass), tiled over (B, T)
# ---------------------------------------------------------------------------
def bn_stats_kernel(x_ref, stat_ref, acc_ref):
    """x_ref: (1, C, BT); stat_ref: (1, C, 2); acc_ref: VMEM (C, 2)."""
    t = pl.program_id(1)

    @pl.when(t == 0)
    def _init():
        acc_ref[...] = jnp.zeros_like(acc_ref)

    x = x_ref[0]                                          # (C, BT)
    s = jnp.sum(x, axis=1, keepdims=True)                 # (C, 1)
    ss = jnp.sum(x * x, axis=1, keepdims=True)            # (C, 1)
    acc_ref[...] += jnp.concatenate([s, ss], axis=1)      # (C, 2)

    @pl.when(t == pl.num_programs(1) - 1)
    def _emit():
        stat_ref[0] = acc_ref[...]


# ---------------------------------------------------------------------------
# Phase 2: normalize + specaugment mask + zero->bias fill (fully parallel)
# ---------------------------------------------------------------------------
def bn_augment_kernel(x_ref, scale_ref, shift_ref, beta_ref, ck_ref, tk_ref,
                      o_ref):
    """x_ref/o_ref: (1, C, BT); scale/shift/beta/ck: (C, 1); tk: (1, BT)."""
    normed = x_ref[0] * scale_ref[...] + shift_ref[...]   # folded BatchNorm
    keep = ck_ref[...] * tk_ref[...]                      # (C, BT) of {0, 1}
    aug = normed * keep                                   # SpecAugment zeros
    # Masked (== 0.0) entries become 0 + beta, matching the in-place fill.
    o_ref[0] = jnp.where(aug == 0.0, aug + beta_ref[...], aug)


# ---------------------------------------------------------------------------
# Wrapper
# ---------------------------------------------------------------------------
def norm_specaugment(x, gamma, beta, time_keep, chan_keep, *, block_t=512):
    """Training-mode NormSpecAugment forward.  x: (B, C, T) float32 (NCL)."""
    B, C, T = x.shape

    # Lane-dense time tiling: block is a multiple of 128 lanes.
    bt = min(block_t, 128 * pl.cdiv(T, 128))
    n_t = pl.cdiv(T, bt)
    t_pad = n_t * bt

    # Zero padding does not perturb the sums; padded columns are sliced off.
    x_p = jnp.pad(x, ((0, 0), (0, 0), (0, t_pad - T)))
    tk = jnp.pad(time_keep, (0, t_pad - T),
                 constant_values=1.0).reshape(1, t_pad).astype(jnp.float32)
    ck = chan_keep.reshape(C, 1).astype(jnp.float32)

    # VMEM budget from the tiled working set (double-buffered x/out blocks,
    # time mask block, per-channel params), clamped below v7x's 64 MiB.
    per_step = (2 * C * bt + bt + 8 * C) * 4
    vmem_limit = int(min(32 * 1024 * 1024, max(8 * 1024 * 1024, 8 * per_step)))

    # --- phase 1: global per-channel stats ---------------------------------
    stats = pl.pallas_call(
        bn_stats_kernel,
        out_shape=jax.ShapeDtypeStruct((B, C, 2), jnp.float32),
        grid=(B, n_t),
        in_specs=[pl.BlockSpec((1, C, bt), lambda b, t: (b, 0, t))],
        out_specs=pl.BlockSpec((1, C, 2), lambda b, t: (b, 0, 0)),
        scratch_shapes=[pltpu.VMEM((C, 2), jnp.float32)],
        compiler_params=pltpu.CompilerParams(
            dimension_semantics=("parallel", "arbitrary"),
            vmem_limit_bytes=vmem_limit),
    )(x_p)

    # Tiny (C,)-sized finish: fold BN into one scale/shift per channel.
    tot = jnp.sum(stats, axis=0)                          # (C, 2)
    n = float(B * T)
    mean = tot[:, 0] / n
    var = tot[:, 1] / n - mean * mean                     # one-pass variance
    scale = gamma * jax.lax.rsqrt(var + BN_EPS)
    shift = beta - mean * scale
    scale = scale.reshape(C, 1)
    shift = shift.reshape(C, 1)
    beta2 = beta.reshape(C, 1)

    # --- phase 2: normalize + mask + bias fill ------------------------------
    param_spec = pl.BlockSpec((C, 1), lambda b, t: (0, 0))
    out_p = pl.pallas_call(
        bn_augment_kernel,
        out_shape=jax.ShapeDtypeStruct((B, C, t_pad), jnp.float32),
        grid=(B, n_t),
        in_specs=[pl.BlockSpec((1, C, bt), lambda b, t: (b, 0, t)),   # x
                  param_spec,                                         # scale
                  param_spec,                                         # shift
                  param_spec,                                         # beta
                  param_spec,                                         # chan keep
                  pl.BlockSpec((1, bt), lambda b, t: (0, t))],        # time keep
        out_specs=pl.BlockSpec((1, C, bt), lambda b, t: (b, 0, t)),
        compiler_params=pltpu.CompilerParams(
            dimension_semantics=("parallel", "parallel"),
            vmem_limit_bytes=vmem_limit),
    )(x_p, scale, shift, beta2, ck, tk)

    return out_p[:, :, :T]


# ---------------------------------------------------------------------------
# Pure-JAX reference (mirrors the PyTorch training-mode forward)
# ---------------------------------------------------------------------------
def reference(x, gamma, beta, time_keep, chan_keep):
    mean = jnp.mean(x, axis=(0, 2), keepdims=True)
    var = jnp.mean((x - mean) ** 2, axis=(0, 2), keepdims=True)     # biased
    g = gamma.reshape(1, -1, 1)
    b = beta.reshape(1, -1, 1)
    normed = (x - mean) * jax.lax.rsqrt(var + BN_EPS) * g + b
    keep = chan_keep.reshape(1, -1, 1) * time_keep.reshape(1, 1, -1)
    aug = normed * keep
    return jnp.where(aug == 0.0, aug + b, aug)


def make_specaugment_masks(key, n_chan, n_time, n_t_masks=4, n_f_masks=2,
                           t_mask_len=4, f_mask_len=10):
    # TODO(synk): torchaudio samples mask lengths from uniform(0, mask_param)
    # with torch's RNG; that stream can't be reproduced, so equivalent
    # contiguous zero spans are sampled with jax.random (same semantics).
    time_keep = np.ones((n_time,), np.float32)
    chan_keep = np.ones((n_chan,), np.float32)
    keys = jax.random.split(key, 2 * (n_t_masks + n_f_masks))
    ki = 0
    for _ in range(n_t_masks):
        length = min(int(jax.random.randint(keys[ki], (), 1, t_mask_len + 1)),
                     n_time)
        ki += 1
        start = int(jax.random.randint(keys[ki], (), 0, n_time - length + 1))
        ki += 1
        time_keep[start:start + length] = 0.0
    for _ in range(n_f_masks):
        length = min(int(jax.random.randint(keys[ki], (), 1, f_mask_len + 1)),
                     max(n_chan - 1, 1))
        ki += 1
        start = int(jax.random.randint(keys[ki], (), 0, n_chan - length + 1))
        ki += 1
        chan_keep[start:start + length] = 0.0
    return jnp.asarray(time_keep), jnp.asarray(chan_keep)


if __name__ == "__main__":
    B, C, T = 2, 4, 16          # (batch, in_chan, frames)

    key = jax.random.PRNGKey(0)
    kx, kg, kb, km = jax.random.split(key, 4)
    x = jax.random.normal(kx, (B, C, T), jnp.float32)
    gamma = 1.0 + 0.1 * jax.random.normal(kg, (C,), jnp.float32)   # bn.weight
    beta = 0.1 * jax.random.normal(kb, (C,), jnp.float32)          # bn.bias
    time_keep, chan_keep = make_specaugment_masks(km, C, T)

    out = jax.block_until_ready(
        norm_specaugment(x, gamma, beta, time_keep, chan_keep))
    ref = jax.block_until_ready(
        reference(x, gamma, beta, time_keep, chan_keep))

    assert out.shape == (B, C, T), out.shape
    np.testing.assert_allclose(np.asarray(out), np.asarray(ref),
                               rtol=1e-4, atol=1e-4)

    print("KERNEL_OK")
</pallas_src>

<mosaic_0001>
module attributes {stable_mosaic.version = 11 : i64} {
  func.func @bn_stats_kernel(%arg0: i32, %arg1: i32, %arg2: memref<1x4x128xf32, #tpu.memory_space<vmem>>, %arg3: memref<1x4x2xf32, #tpu.memory_space<vmem>>, %arg4: memref<4x2xf32, #tpu.memory_space<vmem>>) attributes {dimension_semantics = [#tpu.dimension_semantics<parallel>, #tpu.dimension_semantics<arbitrary>], iteration_bounds = array<i64: 2, 1>, scalar_prefetch = 0 : i64, scratch_operands = 1 : i64, tpu.core_type = #tpu.core_type<tc>, window_params = [{transform_indices = @transform_0, window_bounds = array<i64: 1, 4, 128>}, {transform_indices = @transform_1, window_bounds = array<i64: 1, 4, 2>}]} {
    %c0_i32 = arith.constant 0 : i32
    %0 = arith.cmpi eq, %arg1, %c0_i32 : i32
    %1 = arith.extui %0 : i1 to i32
    %c0_i32_0 = arith.constant 0 : i32
    %2 = arith.cmpi ne, %1, %c0_i32_0 : i32
    scf.if %2 {
      %cst_10 = arith.constant 0.000000e+00 : f32
      %17 = vector.broadcast %cst_10 : f32 to vector<4x2xf32>
      %c0_11 = arith.constant 0 : index
      %c0_12 = arith.constant 0 : index
      %18 = vector.load %arg4[%c0_11, %c0_12] : memref<4x2xf32, #tpu.memory_space<vmem>>, vector<4x2xf32>
      tpu.vector_store %arg4[%c0_11, %c0_12], %17 {strides = array<i32>} : memref<4x2xf32, #tpu.memory_space<vmem>>, vector<4x2xf32>,
    } else {
    }
    %c0 = arith.constant 0 : index
    %c0_1 = arith.constant 0 : index
    %c0_2 = arith.constant 0 : index
    %3 = vector.load %arg2[%c0, %c0_1, %c0_2] : memref<1x4x128xf32, #tpu.memory_space<vmem>>, vector<1x4x128xf32>
    %4 = vector.shape_cast %3 : vector<1x4x128xf32> to vector<4x128xf32>
    %cst = arith.constant dense<0.000000e+00> : vector<4xf32>
    %5 = vector.multi_reduction <add>, %4, %cst [1] : vector<4x128xf32> to vector<4xf32>
    %6 = vector.shape_cast %5 : vector<4xf32> to vector<4x1xf32>
    %7 = arith.mulf %4, %4 : vector<4x128xf32>
    %cst_3 = arith.constant dense<0.000000e+00> : vector<4xf32>
    %8 = vector.multi_reduction <add>, %7, %cst_3 [1] : vector<4x128xf32> to vector<4xf32>
    %9 = vector.shape_cast %8 : vector<4xf32> to vector<4x1xf32>
    %c0_4 = arith.constant 0 : index
    %c0_5 = arith.constant 0 : index
    %10 = vector.load %arg4[%c0_4, %c0_5] : memref<4x2xf32, #tpu.memory_space<vmem>>, vector<4x2xf32>
    %11 = tpu.concatenate %6, %9 in 1 : vector<4x1xf32>, vector<4x1xf32> -> vector<4x2xf32>
    %12 = arith.addf %10, %11 : vector<4x2xf32>
    %c0_6 = arith.constant 0 : index
    %c0_7 = arith.constant 0 : index
    %13 = vector.load %arg4[%c0_6, %c0_7] : memref<4x2xf32, #tpu.memory_space<vmem>>, vector<4x2xf32>
    tpu.vector_store %arg4[%c0_6, %c0_7], %12 {strides = array<i32>} : memref<4x2xf32, #tpu.memory_space<vmem>>, vector<4x2xf32>,
    %c0_i32_8 = arith.constant 0 : i32
    %14 = arith.cmpi eq, %arg1, %c0_i32_8 : i32
    %15 = arith.extui %14 : i1 to i32
    %c0_i32_9 = arith.constant 0 : i32
    %16 = arith.cmpi ne, %15, %c0_i32_9 : i32
    scf.if %16 {
      %c0_10 = arith.constant 0 : index
      %c0_11 = arith.constant 0 : index
      %17 = vector.load %arg4[%c0_10, %c0_11] : memref<4x2xf32, #tpu.memory_space<vmem>>, vector<4x2xf32>
      %c0_12 = arith.constant 0 : index
      %c0_13 = arith.constant 0 : index
      %c0_14 = arith.constant 0 : index
      %18 = vector.load %arg3[%c0_12, %c0_13, %c0_14] : memref<1x4x2xf32, #tpu.memory_space<vmem>>, vector<1x4x2xf32>
      %19 = vector.shape_cast %18 : vector<1x4x2xf32> to vector<4x2xf32>
      %20 = vector.shape_cast %17 : vector<4x2xf32> to vector<1x4x2xf32>
      tpu.vector_store %arg3[%c0_12, %c0_13, %c0_14], %20 {strides = array<i32>} : memref<1x4x2xf32, #tpu.memory_space<vmem>>, vector<1x4x2xf32>,
    } else {
    }
    return
  }
  func.func @transform_0(%arg0: i32, %arg1: i32) -> (i32, i32, i32) {
    %c0_i32 = arith.constant 0 : i32
    %c0_i32_0 = arith.constant 0 : i32
    return %arg0, %c0_i32, %arg1 : i32, i32, i32
  }
  func.func @transform_1(%arg0: i32, %arg1: i32) -> (i32, i32, i32) {
    %c0_i32 = arith.constant 0 : i32
    %c0_i32_0 = arith.constant 0 : i32
    %c0_i32_1 = arith.constant 0 : i32
    return %arg0, %c0_i32, %c0_i32_0 : i32, i32, i32
  }
}

</mosaic_0001>

<llo_original>
// kernel: tpu_custom_call.1
$region0: #{tpu_custom_call.1}
  #allocation0 [shape = 'u32[]', space=smem, size = 0x4, offset = 0x4, fixed_abs, tag = 'smem constant byte address 0x4 - core index']
  #allocation1 [shape = 'u32[144,128]{1,0:T(1,128)}', space=vmem, size = 0x12000, scoped, tag = 'internal scratch']
  #allocation2 [shape = 'f32[4,2]{1,0:T(4,128)}', space=vmem, size = 0x800, scoped, tag = 'scratch operand']
  %s0 = inlined_call_operand.hbm [shape: f32[2,4,128], index: 0, kind: input, shape index: {}]
  %s1 = inlined_call_operand.vmem [shape: f32[2,4,2], index: 1, kind: output, shape index: {}]
  %s2 = sld [smem:[#allocation0]]
  $region49: #{tpu_custom_call.1} parent=0
    _
  %s4 = ssub.s32 1, %s2
  %s5 = scalar_select 0, %s4, %s2
  $region1: #{tpu_custom_call.1} parent=0
    #allocation3 [shape = 'u8[4096]{0}', space=vmem, size = 0x1000, scoped, tag = 'input window, operand 0']
    #allocation4 [shape = 's32[2]{0}', space=sflag, size = 0x8, scoped, tag = 'scoped memory for tpu_custom_call.1']
    %6 = vsyncpa [#allocation4], 0
    %s7 = scalar_lea.sflag [#allocation4], 1
    %8 = vsyncpa %s7, 0
    loop: start=0, step=1, limit=4
    $region2: #{tpu_custom_call.1} parent=1 // loop_pre_header
      _
    $region3: #{tpu_custom_call.1} parent=1 // loop_header
      %s10 = sphi 0, %s14
      %p11 = scmp.ge.s32.totalorder %s10, 4
      %s17 = sphi 0, %s29
      %s18 = sphi 0, %s25
      %s19 = sphi 0, %s17
      %s20 = sphi 0, %s18
      %s21 = sphi 0, %s19
      %s22 = sphi 0, %s20
      %s34 = sphi 0, %s36
      %s37 = sphi 0, %s34
      %s38 = sphi 0, %s37
      %s54 = sphi 0, %s38
      %s60 = sphi 0, %s62
      %s63 = sphi 0, %s60
      %s64 = sphi 0, %s63
      %s80 = sphi 0, %s64
    $region4: #{tpu_custom_call.1} parent=1 // loop_header_branch
      %13 = sbr.rel (%p11) target = $region8
    $region5: #{tpu_custom_call.1} parent=1 // loop_body
      %s15 = ssub.s32 %s10, 1
      %s16 = ssub.s32 %s10, 2
      %s23 = sadd.s32 1, %s18
      %p24 = scmp.ge.s32.totalorder %s23, 1
      %s25 = scalar_select %p24, 0, %s23
      %s26 = sadd.s32 1, %s17
      %s27 = scalar_select %p24, %s26, %s17
      %p28 = scmp.ge.s32.totalorder %s27, 2
      %s29 = scalar_select %p28, 0, %s27
      %s30 = ssub.s32 %s17, %s29
      %s31 = ssub.s32 %s18, %s25
      %s32 = sor.u32 %s30, %s31
      %p33 = scmp.eq.s32.totalorder %s32, 0
      %s35 = sadd.s32 %s34, 1
      %s36 = scalar_select %p33, %s34, %s35
      %p39 = pneg %p33
      %p40 = scmp.eq.s32.totalorder %s10, 1
      %p41 = por %p39, %p40
      %p42 = scmp.ne.s32.totalorder %s34, %s37
      %p43 = scmp.eq.s32.totalorder %s10, 0
      %p44 = por %p42, %p43
      %p45 = scmp.ne.s32.totalorder %s34, %s37
      %p46 = scmp.eq.s32.totalorder %s15, 1
      %p47 = por %p45, %p46
      %p48 = scmp.ne.s32.totalorder %s37, %s38
      %p49 = scmp.eq.s32.totalorder %s15, 0
      %p50 = por %p48, %p49
      %p51 = scmp.ne.s32.totalorder %s37, %s38
      %p52 = scmp.eq.s32.totalorder %s16, 1
      %p53 = por %p51, %p52
      %p55 = scmp.ne.s32.totalorder %s38, %s54
      %p56 = scmp.eq.s32.totalorder %s16, 0
      %p57 = por %p55, %p56
      %s58 = ssub.s32 %s17, %s29
      %p59 = scmp.eq.s32.totalorder %s58, 0
      %s61 = sadd.s32 %s60, 1
      %s62 = scalar_select %p59, %s60, %s61
      %p65 = pneg %p59
      %p66 = scmp.eq.s32.totalorder %s10, 1
      %p67 = por %p65, %p66
      %p68 = scmp.ne.s32.totalorder %s60, %s63
      %p69 = scmp.eq.s32.totalorder %s10, 0
      %p70 = por %p68, %p69
      %p71 = scmp.ne.s32.totalorder %s60, %s63
      %p72 = scmp.eq.s32.totalorder %s15, 1
      %p73 = por %p71, %p72
      %p74 = scmp.ne.s32.totalorder %s63, %s64
      %p75 = scmp.eq.s32.totalorder %s15, 0
      %p76 = por %p74, %p75
      %p77 = scmp.ne.s32.totalorder %s63, %s64
      %p78 = scmp.eq.s32.totalorder %s16, 1
      %p79 = por %p77, %p78
      %p81 = scmp.ne.s32.totalorder %s64, %s80
      %p82 = scmp.eq.s32.totalorder %s16, 0
      %p83 = por %p81, %p82
      %p84 = scmp.le.s32.totalorder 1, %s10
      %p85 = scmp.lt.s32.totalorder %s10, 3
      %p86 = pnand %p84, %p85
      %p87 = pneg %p86
      // Predicated region
      $region9: #{tpu_custom_call.1} parent=5 // pred_check
        _
      $region10: #{tpu_custom_call.1} parent=5 // pred_check_branch
        %89 = sbr.rel (%p86) target = $region12
      $region11: #{tpu_custom_call.1} parent=5 // pred_region
        %s90 = ssub.s32 %s10, 1
      $region12: #{tpu_custom_call.1} parent=5 // pred_fallthru
        _
      %p91 = scmp.lt.s32.totalorder %s10, 2
      // Predicated region
      $region13: #{tpu_custom_call.1} parent=5 // pred_check
        %p92 = pneg %p91
      $region14: #{tpu_custom_call.1} parent=5 // pred_check_branch
        %94 = sbr.rel (%p92) target = $region16
      $region15: #{tpu_custom_call.1} parent=5 // pred_region
        // Predicated region
        $region17: #{tpu_custom_call.1} parent=15 // pred_check
          %p95 = pneg %p44
        $region18: #{tpu_custom_call.1} parent=15 // pred_check_branch
          %97 = sbr.rel (%p95) target = $region20
        $region19: #{tpu_custom_call.1} parent=15 // pred_region
          %s98 = sand.u32 %s34, 1
          %s99 = scalar_lea.sflag [#allocation4], %s98
          %s100 = sand.u32 %s34, 1
          %s101 = smul.addr %s100, 4
          %s102 = scalar_lea.vmem [#allocation3], %s101
          %s104 = ssub.s32 64, 64
          %105 = vsyncadd %s99, %s104
          %s106 = sadd.s32 %s18, %s17
          %s107 = smul.addr %s106, 64
          %s108 = scalar_lea.hbm %s0, %s107
          %s110 = sshll.u32 %s102, 4
          %s111 = int_to_ptr.vmem [resolvable:$true] %s110
          %113 = dma.hbm_to_vmem [thread:$0]  %s108, 64, %s111, %s99
        $region20: #{tpu_custom_call.1} parent=15 // pred_fallthru
          _
      $region16: #{tpu_custom_call.1} parent=5 // pred_fallthru
        _
      %p114 = scmp.le.s32.totalorder 1, %s10
      %p115 = scmp.lt.s32.totalorder %s10, 3
      %p116 = pnand %p114, %p115
      %p117 = pneg %p116
      // Predicated region
      $region21: #{tpu_custom_call.1} parent=5 // pred_check
        _
      $region22: #{tpu_custom_call.1} parent=5 // pred_check_branch
        %119 = sbr.rel (%p116) target = $region24
      $region23: #{tpu_custom_call.1} parent=5 // pred_region
        %s120 = ssub.s32 %s10, 1
        %s121 = sand.u32 %s37, 1
        %s122 = scalar_lea.sflag [#allocation4], %s121
        %s123 = sand.u32 %s37, 1
        %s124 = smul.addr %s123, 4
        %s125 = scalar_lea.vmem [#allocation3], %s124
        // Predicated region
        $region25: #{tpu_custom_call.1} parent=23 // pred_check
          %p126 = pneg %p50
        $region26: #{tpu_custom_call.1} parent=23 // pred_check_branch
          %128 = sbr.rel (%p126) target = $region28
        $region27: #{tpu_custom_call.1} parent=23 // pred_region
          %129 = dma.done %s122, 64
        $region28: #{tpu_custom_call.1} parent=23 // pred_fallthru
          _
        %s130 = sand.u32 %s37, 1
        %s131 = scalar_lea.sflag [#allocation4], %s130
        %s132 = sand.u32 %s37, 1
        %s133 = smul.addr %s132, 4
        %s134 = scalar_lea.vmem [#allocation3], %s133
        %p135 = pneg %p50
        %p136 = pneg %p47
        %p137 = pneg %p76
        %p138 = pneg %p73
        %p139 = scmp.lt.s32.totalorder %s19, 1
        %s140 = scalar_select %p139, %s19, 1
        %s141 = smul.addr %s140, 4
        %s142 = scalar_lea.vmem %s1, %s141
        %p143 = scmp.lt.s32.totalorder %s19, 1
        %s144 = scalar_select %p143, %s19, 1
        %s145 = smul.addr %s144, 4
        %s146 = scalar_lea.vmem %s1, %s145
        %p147 = scmp.eq.s32.totalorder %s20, 0
        // Predicated region
        $region29: #{tpu_custom_call.1} parent=23 // pred_check
          %p148 = pneg %p147
        $region30: #{tpu_custom_call.1} parent=23 // pred_check_branch
          %150 = sbr.rel (%p148) target = $region32
        $region31: #{tpu_custom_call.1} parent=23 // pred_region
          %vm151 = vcmask 11264
          %152 = vst.msk [vmem:[#allocation2] sm:$0xf] %vm151, 0.0
        $region32: #{tpu_custom_call.1} parent=23 // pred_fallthru
          _
        %v153 = vld [vmem:[%s125] sm:$0xf]
        %vm154 = vcmask 1043456
        %v155 = vsel %vm154, %v153, 0.0
        %156 = vadd.xlane.f32.xlu0 %v155
        %v157 = vpop.xlane.xlu0 %156
        %v158 = vmul.f32 %v153, %v153
        %v159 = vsel %vm154, %v158, 0.0
        %160 = vadd.xlane.f32.xlu0 %v159
        %v161 = vpop.xlane.xlu0 %160
        %v162 = vld [vmem:[#allocation2] sm:$0xf]
        %vm163 = vcmask 7168
        %v164 = vsel %vm163, %v157, %v161
        %v165 = vadd.f32 %v162, %v164
        %vm166 = vcmask 11264
        %167 = vst.msk [vmem:[#allocation2] sm:$0xf] %vm166, %v165
        // Predicated region
        $region33: #{tpu_custom_call.1} parent=23 // pred_check
          %p168 = pneg %p147
        $region34: #{tpu_custom_call.1} parent=23 // pred_check_branch
          %170 = sbr.rel (%p168) target = $region36
        $region35: #{tpu_custom_call.1} parent=23 // pred_region
          %v171 = vld [vmem:[#allocation2] sm:$0xf]
          %172 = vst.msk [vmem:[%s146] sm:$0xf] %vm166, %v171
        $region36: #{tpu_custom_call.1} parent=23 // pred_fallthru
          _
        %p173 = scmp.lt.s32.totalorder %s19, 1
        %s174 = scalar_select %p173, %s19, 1
        %s175 = smul.addr %s174, 4
        %s176 = scalar_lea.vmem %s1, %s175
        // Predicated region
        $region37: #{tpu_custom_call.1} parent=23 // pred_check
          %p177 = pneg %p73
        $region38: #{tpu_custom_call.1} parent=23 // pred_check_branch
          %179 = sbr.rel (%p177) target = $region40
        $region39: #{tpu_custom_call.1} parent=23 // pred_region
          _
        $region40: #{tpu_custom_call.1} parent=23 // pred_fallthru
          _
      $region24: #{tpu_custom_call.1} parent=5 // pred_fallthru
        _
      %p180 = scmp.le.s32.totalorder 2, %s10
      // Predicated region
      $region41: #{tpu_custom_call.1} parent=5 // pred_check
        %p181 = pneg %p180
      $region42: #{tpu_custom_call.1} parent=5 // pred_check_branch
        %183 = sbr.rel (%p181) target = $region44
      $region43: #{tpu_custom_call.1} parent=5 // pred_region
        %s184 = ssub.s32 %s10, 2
        // Predicated region
        $region45: #{tpu_custom_call.1} parent=43 // pred_check
          %p185 = pneg %p79
        $region46: #{tpu_custom_call.1} parent=43 // pred_check_branch
          %187 = sbr.rel (%p185) target = $region48
        $region47: #{tpu_custom_call.1} parent=43 // pred_region
          %p188 = scmp.lt.s32.totalorder %s21, 1
          %s189 = scalar_select %p188, %s21, 1
          %s190 = smul.addr %s189, 4
          %s191 = scalar_lea.vmem %s1, %s190
        $region48: #{tpu_custom_call.1} parent=43 // pred_fallthru
          _
      $region44: #{tpu_custom_call.1} parent=5 // pred_fallthru
        _
    $region6: #{tpu_custom_call.1} parent=1 // loop_footer
      %s14 = sadd.s32 1, %s10
    $region7: #{tpu_custom_call.1} parent=1 // loop_footer_branch
      %9 = sbr.rel target = $region3
    $region8: #{tpu_custom_call.1} parent=1 // loop_exit
      _
    %192 = vsyncpa [#allocation4], 1
    %s193 = scalar_lea.sflag [#allocation4], 1
    %194 = vsyncpa %s193, 1

</llo_original>
